<compile_context>
chip_gen: v5e
topology: v5e:2x2
jax: 0.10.0
libtpu: 0.0.40
codegen_flags: <defaults>
</compile_context>

<pallas_src>
import functools
import math

import jax
import jax.numpy as jnp
from jax.experimental import pallas as pl
from jax.experimental.pallas import tpu as pltpu

MiB = 1024 * 1024


def _round_up(x: int, m: int) -> int:
    return ((x + m - 1) // m) * m


def _cdiv(a: int, b: int) -> int:
    return (a + b - 1) // b


def _balanced_tile(dim: int, max_tile: int, align: int) -> int:
    """Aligned tile <= max_tile (or the full aligned dim if it fits), chosen so
    the number of blocks is minimal and padding per block is balanced."""
    d_al = _round_up(dim, align)
    if d_al <= max_tile:
        return d_al
    nblk = _cdiv(d_al, max_tile)
    return _round_up(_cdiv(d_al, nblk), align)


def _vmem_cap_bytes() -> int:
    """~75% of physical VMEM (compiler-scratch headroom), clamped to [16,100] MiB."""
    cap = 64 * MiB
    try:
        info = pltpu.get_tpu_info()
        cap = int(getattr(info, "vmem_capacity_bytes", cap))
    except Exception:
        pass
    return int(min(max(cap * 3 // 4, 16 * MiB), 100 * MiB))


def _num_tensorcores() -> int:
    """Best-effort: v7x has 2 TensorCores per chip sharded over 'parallel' axes."""
    try:
        kind = jax.devices()[0].device_kind.lower()
        if "v7" in kind:
            return 2
    except Exception:
        pass
    return 1


# ----------------------------- kernels --------------------------------------


def _make_kernel_2d(has_bias: bool):
    """Single-K-step kernel: one dot per output tile, no accumulator branches."""

    def kernel(x_ref, wt_ref, *rest):
        if has_bias:
            b_ref, o_ref = rest
        else:
            (o_ref,) = rest
        acc = jnp.dot(x_ref[...], wt_ref[...], preferred_element_type=jnp.float32)
        if has_bias:
            acc = acc + b_ref[...]
        o_ref[...] = acc.astype(o_ref.dtype)

    return kernel


def _make_kernel_3d(has_bias: bool, use_scratch: bool):
    """Multi-K-step kernel. For f32 outputs (use_scratch=False) we accumulate
    directly into the resident output block and skip the separate scratch."""

    def kernel(x_ref, wt_ref, *rest):
        idx = 0
        b_ref = None
        if has_bias:
            b_ref = rest[idx]
            idx += 1
        o_ref = rest[idx]
        idx += 1
        acc_ref = rest[idx] if use_scratch else o_ref

        k = pl.program_id(2)

        @pl.when(k == 0)
        def _():
            acc_ref[...] = jnp.zeros_like(acc_ref)

        acc_ref[...] += jnp.dot(
            x_ref[...], wt_ref[...], preferred_element_type=jnp.float32
        )

        @pl.when(k == pl.num_programs(2) - 1)
        def _():
            out = acc_ref[...]
            if has_bias:
                out = out + b_ref[...]
            o_ref[...] = out.astype(o_ref.dtype)

    return kernel


# --------------------------- parameter packing ------------------------------


def pack_params(weight, bias=None, *, tn=512, tk=2048, compute_dtype=jnp.bfloat16):
    """One-time parameter preprocessing (call this OUTSIDE the per-step jit):
    weight [C_out, C_in] -> transposed, K/N-padded, compute-dtype [k_p, n_p];
    bias -> f32 [1, n_p] (or None).  Zero K-padding is exact for the matmul."""
    c_out, c_in = weight.shape
    tk_eff = _balanced_tile(c_in, tk, 128)
    tn_eff = _balanced_tile(c_out, tn, 128)
    k_p = _round_up(c_in, tk_eff)
    n_p = _round_up(c_out, tn_eff)
    wt_p = jnp.pad(
        weight.T.astype(compute_dtype), ((0, k_p - c_in), (0, n_p - c_out))
    )
    b_p = None
    if bias is not None:
        b_p = jnp.pad(bias.astype(jnp.float32), (0, n_p - c_out)).reshape(1, n_p)
    return wt_p, b_p


# ------------------------------- forward ------------------------------------


@functools.partial(
    jax.jit,
    static_argnames=("c_out", "tm", "tn", "tk", "compute_dtype", "out_dtype"),
)
def min4_linear_packed(
    x,
    wt_p,
    b_p=None,
    *,
    c_out,
    tm=512,
    tn=512,
    tk=2048,
    compute_dtype=jnp.bfloat16,
    out_dtype=None,
):
    """y = x @ W^T + b with pre-packed weight (see pack_params).

    x:    [..., C_in]
    wt_p: [k_p, n_p]  pre-transposed / padded / compute-dtype weight
    b_p:  [1, n_p] f32 or None
    """
    orig_lead = x.shape[:-1]
    c_in = x.shape[-1]
    k_p, n_p = wt_p.shape
    assert k_p >= c_in and n_p >= c_out
    if out_dtype is None:
        out_dtype = x.dtype
    out_dtype = jnp.dtype(out_dtype)
    has_bias = b_p is not None

    x2 = x.reshape(-1, c_in)
    m = x2.shape[0]

    # K / N tiles: re-derived from the padded dims — consistent with pack_params.
    tk_eff = _balanced_tile(k_p, tk, 128)
    tn_eff = _balanced_tile(n_p, tn, 128)
    nk = k_p // tk_eff
    nn = n_p // tn_eff

    # M tile: balanced to minimize over-padding (only K padding is required
    # for correctness; M/N padding is layout-only).
    tm_eff = _balanced_tile(m, tm, 8)
    m_p = _round_up(m, tm_eff)
    nm = m_p // tm_eff

    # Keep both v7x TensorCores busy: guarantee >=2 blocks on a parallel axis.
    if _num_tensorcores() > 1 and nm == 1 and nn == 1 and _round_up(m, 8) >= 16:
        tm_eff = _round_up(_cdiv(_round_up(m, 8), 2), 8)
        m_p = _round_up(m, tm_eff)
        nm = m_p // tm_eff

    # Pad + cast activation (zero K-padding contributes 0 to the accumulation).
    x_p = jnp.pad(x2.astype(compute_dtype), ((0, m_p - m), (0, k_p - c_in)))

    # f32 outputs accumulate directly into the resident output block.
    use_scratch = (nk > 1) and (out_dtype != jnp.dtype(jnp.float32))

    in_item = jnp.dtype(compute_dtype).itemsize
    out_item = out_dtype.itemsize
    vmem_est = (
        2 * (tm_eff * tk_eff + tk_eff * tn_eff) * in_item
        + 2 * tm_eff * tn_eff * out_item
        + (tm_eff * tn_eff * 4 if use_scratch else 0)
        + (2 * tn_eff * 4 if has_bias else 0)
    )
    vmem_limit = int(min(max(2 * vmem_est, 16 * MiB), _vmem_cap_bytes()))

    cost = pl.CostEstimate(
        flops=2 * m_p * n_p * k_p,
        bytes_accessed=(
            m_p * k_p * in_item
            + k_p * n_p * in_item
            + m_p * n_p * out_item
            + (n_p * 4 if has_bias else 0)
        ),
        transcendentals=0,
    )

    if nk == 1:
        kernel = _make_kernel_2d(has_bias)
        grid = (nm, nn)
        in_specs = [
            pl.BlockSpec((tm_eff, tk_eff), lambda i, j: (i, 0)),
            pl.BlockSpec((tk_eff, tn_eff), lambda i, j: (0, j)),
        ]
        if has_bias:
            in_specs.append(pl.BlockSpec((1, tn_eff), lambda i, j: (0, j)))
        out_spec = pl.BlockSpec((tm_eff, tn_eff), lambda i, j: (i, j))
        scratch = []
        dims = ("parallel", "parallel")
    else:
        kernel = _make_kernel_3d(has_bias, use_scratch)
        grid = (nm, nn, nk)
        in_specs = [
            pl.BlockSpec((tm_eff, tk_eff), lambda i, j, k: (i, k)),
            pl.BlockSpec((tk_eff, tn_eff), lambda i, j, k: (k, j)),
        ]
        if has_bias:
            in_specs.append(pl.BlockSpec((1, tn_eff), lambda i, j, k: (0, j)))
        out_spec = pl.BlockSpec((tm_eff, tn_eff), lambda i, j, k: (i, j))
        scratch = [pltpu.VMEM((tm_eff, tn_eff), jnp.float32)] if use_scratch else []
        dims = ("parallel", "parallel", "arbitrary")

    args = (x_p, wt_p) + ((b_p,) if has_bias else ())

    out_p = pl.pallas_call(
        kernel,
        out_shape=jax.ShapeDtypeStruct((m_p, n_p), out_dtype),
        grid_spec=pltpu.PrefetchScalarGridSpec(
            num_scalar_prefetch=0,
            grid=grid,
            in_specs=in_specs,
            out_specs=out_spec,
            scratch_shapes=scratch,
        ),
        compiler_params=pltpu.CompilerParams(
            dimension_semantics=dims,
            vmem_limit_bytes=vmem_limit,
        ),
        cost_estimate=cost,
    )(*args)

    out = out_p[:m, :c_out]
    return out.reshape(*orig_lead, c_out)


def min4_linear(
    x, weight, bias=None, *, tm=512, tn=512, tk=2048, compute_dtype=jnp.bfloat16
):
    """F.linear equivalent (convenience path: packs the weight per call).
    For repeated calls, pack_params() once and use min4_linear_packed()."""
    wt_p, b_p = pack_params(weight, bias, tn=tn, tk=tk, compute_dtype=compute_dtype)
    return min4_linear_packed(
        x,
        wt_p,
        b_p,
        c_out=weight.shape[0],
        tm=tm,
        tn=tn,
        tk=tk,
        compute_dtype=compute_dtype,
        out_dtype=x.dtype,
    )


def init_params(key, in_channels, out_channels):
    """Deterministic init mimicking the module defaults:
    weight: kaiming_uniform(fan=in_channels, a=sqrt(5)) == U(-1/sqrt(fan), 1/sqrt(fan))
    bias:   inits.uniform(in_channels, bias)            == U(-1/sqrt(fan), 1/sqrt(fan))
    """
    kw, kb = jax.random.split(key)
    bound = 1.0 / math.sqrt(in_channels)
    weight = jax.random.uniform(
        kw, (out_channels, in_channels), jnp.float32, -bound, bound
    )
    bias = jax.random.uniform(kb, (out_channels,), jnp.float32, -bound, bound)
    return weight, bias


if __name__ == "__main__":
    key = jax.random.PRNGKey(0)
    k_x1, k_p1, k_x2, k_p2 = jax.random.split(key, 4)

    # --- case 1: tiny shapes (exercise padding + single-K 2-D grid), f32 compute
    N1, C_IN1, C_OUT1 = 8, 32, 16
    x1 = jax.random.normal(k_x1, (N1, C_IN1), jnp.float32)
    w1, b1 = init_params(k_p1, C_IN1, C_OUT1)
    y1 = jax.block_until_ready(min4_linear(x1, w1, b1, compute_dtype=jnp.float32))
    y1_ref = x1 @ w1.T + b1
    assert y1.shape == (N1, C_OUT1)
    assert jnp.allclose(y1, y1_ref, atol=1e-5, rtol=1e-5)

    # --- case 1b: same shapes, no-bias kernel variant
    y1nb = jax.block_until_ready(min4_linear(x1, w1, None, compute_dtype=jnp.float32))
    assert jnp.allclose(y1nb, x1 @ w1.T, atol=1e-5, rtol=1e-5)

    # --- case 2: bf16 MXU path with explicit small tiles so the (M, N, K) grid
    #             has multiple steps (accumulation + parallel axes), packed API.
    N2, C_IN2, C_OUT2 = 96, 160, 72
    x2 = jax.random.normal(k_x2, (2, N2, C_IN2), jnp.float32)  # leading batch dim
    w2, b2 = init_params(k_p2, C_IN2, C_OUT2)
    wt_p2, b_p2 = pack_params(w2, b2, tn=128, tk=128, compute_dtype=jnp.bfloat16)
    y2 = jax.block_until_ready(
        min4_linear_packed(
            x2, wt_p2, b_p2, c_out=C_OUT2, tm=64, tn=128, tk=128,
            compute_dtype=jnp.bfloat16,
        )
    )
    # Reference in the same (bf16 inputs, f32 accumulation) precision.
    y2_ref = (
        jnp.einsum(
            "bnc,co->bno",
            x2.astype(jnp.bfloat16),
            w2.T.astype(jnp.bfloat16),
            preferred_element_type=jnp.float32,
        )
        + b2
    )
    assert y2.shape == (2, N2, C_OUT2)
    assert jnp.allclose(y2, y2_ref, atol=2e-2, rtol=2e-2)

    print("KERNEL_OK")
</pallas_src>

<mosaic_0001>
module attributes {stable_mosaic.version = 11 : i64} {
  func.func @kernel(%arg0: i32, %arg1: i32, %arg2: memref<8x128xf32, #tpu.memory_space<vmem>>, %arg3: memref<128x128xf32, #tpu.memory_space<vmem>>, %arg4: memref<1x128xf32, #tpu.memory_space<vmem>>, %arg5: memref<8x128xf32, #tpu.memory_space<vmem>>) attributes {dimension_semantics = [#tpu.dimension_semantics<parallel>, #tpu.dimension_semantics<parallel>], iteration_bounds = array<i64: 1, 1>, scalar_prefetch = 0 : i64, scratch_operands = 0 : i64, tpu.core_type = #tpu.core_type<tc>, window_params = [{transform_indices = @transform_0, window_bounds = array<i64: 8, 128>}, {transform_indices = @transform_1, window_bounds = array<i64: 128, 128>}, {transform_indices = @transform_2, window_bounds = array<i64: 1, 128>}, {transform_indices = @transform_3, window_bounds = array<i64: 8, 128>}]} {
    %c0 = arith.constant 0 : index
    %c0_0 = arith.constant 0 : index
    %0 = vector.load %arg2[%c0, %c0_0] : memref<8x128xf32, #tpu.memory_space<vmem>>, vector<8x128xf32>
    %c0_1 = arith.constant 0 : index
    %c0_2 = arith.constant 0 : index
    %1 = vector.load %arg3[%c0_1, %c0_2] : memref<128x128xf32, #tpu.memory_space<vmem>>, vector<128x128xf32>
    %cst = arith.constant dense<0.000000e+00> : vector<8x128xf32>
    %2 = tpu.matmul %0, %1, %cst {dimension_numbers = #tpu.dot_dimension_numbers<[1], [0], [0], [1], [0, 0, 1, 1], [], []>} : vector<8x128xf32>, vector<128x128xf32>, vector<8x128xf32> -> vector<8x128xf32>
    %c0_3 = arith.constant 0 : index
    %c0_4 = arith.constant 0 : index
    %3 = vector.load %arg4[%c0_3, %c0_4] : memref<1x128xf32, #tpu.memory_space<vmem>>, vector<1x128xf32>
    %4 = vector.broadcast %3 : vector<1x128xf32> to vector<8x128xf32>
    %5 = arith.addf %2, %4 : vector<8x128xf32>
    %c0_5 = arith.constant 0 : index
    %c0_6 = arith.constant 0 : index
    %6 = vector.load %arg5[%c0_5, %c0_6] : memref<8x128xf32, #tpu.memory_space<vmem>>, vector<8x128xf32>
    tpu.vector_store %arg5[%c0_5, %c0_6], %5 {strides = array<i32>} : memref<8x128xf32, #tpu.memory_space<vmem>>, vector<8x128xf32>,
    return
  }
  func.func @transform_0(%arg0: i32, %arg1: i32) -> (i32, i32) {
    %c0_i32 = arith.constant 0 : i32
    %c0_i32_0 = arith.constant 0 : i32
    return %arg0, %c0_i32 : i32, i32
  }
  func.func @transform_1(%arg0: i32, %arg1: i32) -> (i32, i32) {
    %c0_i32 = arith.constant 0 : i32
    %c0_i32_0 = arith.constant 0 : i32
    return %c0_i32, %arg1 : i32, i32
  }
  func.func @transform_2(%arg0: i32, %arg1: i32) -> (i32, i32) {
    %c0_i32 = arith.constant 0 : i32
    %c0_i32_0 = arith.constant 0 : i32
    return %c0_i32, %arg1 : i32, i32
  }
  func.func @transform_3(%arg0: i32, %arg1: i32) -> (i32, i32) {
    %c0_i32 = arith.constant 0 : i32
    return %arg0, %arg1 : i32, i32
  }
}

</mosaic_0001>

<llo_original>
// kernel: min4_linear_packed.1
$region0: #{min4_linear_packed.1}
  #allocation0 [shape = 'u32[]', space=smem, size = 0x4, offset = 0x4, fixed_abs, tag = 'smem constant byte address 0x4 - core index']
  #allocation1 [shape = 'u32[72,128]{1,0:T(1,128)}', space=vmem, size = 0x9000, scoped, tag = 'internal scratch']
  %s0 = inlined_call_operand.vmem [shape: f32[8,128], index: 0, kind: input, shape index: {}]
  %s1 = inlined_call_operand.hbm [shape: f32[128,128], index: 1, kind: input, shape index: {}]
  %s2 = inlined_call_operand.vmem [shape: f32[1,128], index: 2, kind: input, shape index: {}]
  %s3 = inlined_call_operand.hbm [shape: f32[8,128], index: 3, kind: output, shape index: {}]
  %s4 = sld [smem:[#allocation0]]
  $region26: #{min4_linear_packed.1} parent=0
    _
  %s6 = ssub.s32 1, %s4
  %s7 = scalar_select 0, %s6, %s4
  $region1: #{min4_linear_packed.1} parent=0
    #allocation2 [shape = 'u8[65536]{0}', space=vmem, size = 0x10000, scoped, tag = 'input window, operand 1, single buffered']
    #allocation3 [shape = 's32[1]{0}', space=sflag, size = 0x4, scoped, tag = 'scoped memory for min4_linear_packed.1']
    #allocation4 [shape = 's32[1]{0}', space=sflag, size = 0x4, scoped, tag = 'scoped memory for min4_linear_packed.1']
    #allocation5 [shape = 'u8[4096]{0}', space=vmem, size = 0x1000, scoped, tag = 'output window, operand 0, single buffered']
    %8 = vsyncpa [#allocation3], 0
    %9 = vsyncpa [#allocation4], 0
    // Predicated region
    $region2: #{min4_linear_packed.1} parent=1 // pred_check
      _
    $region3: #{min4_linear_packed.1} parent=1 // pred_check_branch
      %11 = sbr.rel (0) target = $region5
    $region4: #{min4_linear_packed.1} parent=1 // pred_region
      _
    $region5: #{min4_linear_packed.1} parent=1 // pred_fallthru
      _
    // Predicated region
    $region6: #{min4_linear_packed.1} parent=1 // pred_check
      _
    $region7: #{min4_linear_packed.1} parent=1 // pred_check_branch
      %13 = sbr.rel (0) target = $region9
    $region8: #{min4_linear_packed.1} parent=1 // pred_region
      %15 = vsyncadd [#allocation3], 0
      %s16 = sshll.u32 %s1, 4
      %s17 = int_to_ptr.hbm [resolvable:$true] %s16
      %s18 = sshll.u32 [#allocation2], 4
      %s19 = int_to_ptr.vmem [resolvable:$true] %s18
      %24 = dma.hbm_to_vmem [thread:$0]  %s17, 2048, %s19, [#allocation3], 128, 128, 8
    $region9: #{min4_linear_packed.1} parent=1 // pred_fallthru
      _
    // Predicated region
    $region10: #{min4_linear_packed.1} parent=1 // pred_check
      _
    $region11: #{min4_linear_packed.1} parent=1 // pred_check_branch
      %26 = sbr.rel (0) target = $region13
    $region12: #{min4_linear_packed.1} parent=1 // pred_region
      _
    $region13: #{min4_linear_packed.1} parent=1 // pred_fallthru
      _
    // Predicated region
    $region14: #{min4_linear_packed.1} parent=1 // pred_check
      _
    $region15: #{min4_linear_packed.1} parent=1 // pred_check_branch
      %28 = sbr.rel (0) target = $region17
    $region16: #{min4_linear_packed.1} parent=1 // pred_region
      %30 = dma.done [#allocation3], 2048
    $region17: #{min4_linear_packed.1} parent=1 // pred_fallthru
      _
    %v31 = vld [vmem:[%s0] sm:$0xff]
    %v32 = vld [vmem:[#allocation2] sm:$0xff]
    %v33 = vld [vmem:[#allocation2 + $0x8] sm:$0xff]
    %v34 = vld [vmem:[#allocation2 + $0x10] sm:$0xff]
    %v35 = vld [vmem:[#allocation2 + $0x18] sm:$0xff]
    %v36 = vld [vmem:[#allocation2 + $0x20] sm:$0xff]
    %v37 = vld [vmem:[#allocation2 + $0x28] sm:$0xff]
    %v38 = vld [vmem:[#allocation2 + $0x30] sm:$0xff]
    %v39 = vld [vmem:[#allocation2 + $0x38] sm:$0xff]
    %v40 = vld [vmem:[#allocation2 + $0x40] sm:$0xff]
    %v41 = vld [vmem:[#allocation2 + $0x48] sm:$0xff]
    %v42 = vld [vmem:[#allocation2 + $0x50] sm:$0xff]
    %v43 = vld [vmem:[#allocation2 + $0x58] sm:$0xff]
    %v44 = vld [vmem:[#allocation2 + $0x60] sm:$0xff]
    %v45 = vld [vmem:[#allocation2 + $0x68] sm:$0xff]
    %v46 = vld [vmem:[#allocation2 + $0x70] sm:$0xff]
    %v47 = vld [vmem:[#allocation2 + $0x78] sm:$0xff]
    %v48 = vld [vmem:[%s2] sm:$0x1]
    %v50 = vperm.slane %v48, 0
    %52 = vmatpush.msra.mxu0 %v47
    %53 = vmatpush.msra.mxu0 %v46
    %54 = vmatpush.msra.mxu0 %v45
    %55 = vmatpush.msra.mxu0 %v44
    %56 = vmatpush.msra.mxu0 %v43
    %57 = vmatpush.msra.mxu0 %v42
    %58 = vmatpush.msra.mxu0 %v41
    %59 = vmatpush.msra.mxu0 %v40
    %60 = vmatpush.msra.mxu0 %v39
    %61 = vmatpush.msra.mxu0 %v38
    %62 = vmatpush.msra.mxu0 %v37
    %63 = vmatpush.msra.mxu0 %v36
    %64 = vmatpush.msra.mxu0 %v35
    %65 = vmatpush.msra.mxu0 %v34
    %66 = vmatpush.msra.mxu0 %v33
    %67 = vmatpush.msra.mxu0 %v32
    %68 = vmatmul.f32.gmra.mxu0 %v31
    %v69 = vpop.f32.mrf.mxu0
    %v70 = vadd.f32 %v50, %v69
    %71 = vdwg.mxu0
    %72 = vst [vmem:[#allocation5] sm:$0xff] %v70
    // Predicated region
    $region18: #{min4_linear_packed.1} parent=1 // pred_check
      _
    $region19: #{min4_linear_packed.1} parent=1 // pred_check_branch
      %74 = sbr.rel (0) target = $region21
    $region20: #{min4_linear_packed.1} parent=1 // pred_region
      %76 = vsyncadd [#allocation4], 0
      %s78 = sshll.u32 [#allocation5], 4
      %s79 = int_to_ptr.vmem [resolvable:$true] %s78
      %s80 = sshll.u32 %s3, 4
      %s81 = int_to_ptr.hbm [resolvable:$true] %s80
      %83 = dma.vmem_to_hbm [thread:$0]  %s79, 128, %s81, [#allocation4]
    $region21: #{min4_linear_packed.1} parent=1 // pred_fallthru
      _
    // Predicated region
    $region22: #{min4_linear_packed.1} parent=1 // pred_check
      _
    $region23: #{min4_linear_packed.1} parent=1 // pred_check_branch
      %85 = sbr.rel (0) target = $region25
    $region24: #{min4_linear_packed.1} parent=1 // pred_region
      %87 = dma.done [#allocation4], 128
    $region25: #{min4_linear_packed.1} parent=1 // pred_fallthru
      _
    %88 = vsyncpa [#allocation3], 1
    %89 = vsyncpa [#allocation4], 1

</llo_original>
